<compile_context>
chip_gen: v7x
topology: tpu7x:2x2x1
jax: 0.10.0
libtpu: 0.0.40
codegen_flags: <defaults>
</compile_context>

<pallas_src>
import jax
import jax.numpy as jnp
from jax.experimental import pallas as pl
from jax.experimental.pallas import tpu as pltpu


def _round_up(n, m):
    return ((n + m - 1) // m) * m


def pack_params(w1, b1, w2, b2):
    """Fold both Linear layers into one affine map at pack time.

    out = (x @ W1^T + b1) @ W2^T + b2 = x @ (W1^T @ W2^T) + (b1 @ W2^T + b2)

    Packed layout (sublane-aligned):
        rows [0 : d_in)      fused weight  W = W1^T @ W2^T   (in x out)
        rows [d_in : dp)     zero padding  (dp = round_up(d_in, 8))
        row  [dp]            fused bias    b = b1 @ W2^T + b2
        rows [dp+1 : dp+8)   zero padding  (total rows multiple of 8)
    """
    d_in = w1.shape[1]
    d_out = w2.shape[0]
    w_fused = (w1.T @ w2.T).astype(jnp.float32)       # (d_in, d_out)
    b_fused = (b1 @ w2.T + b2).astype(jnp.float32)    # (d_out,)
    dp = _round_up(d_in, 8)
    packed = jnp.zeros((dp + 8, d_out), jnp.float32)
    packed = packed.at[0:d_in, :].set(w_fused)
    packed = packed.at[dp, :].set(b_fused)
    return packed


# ----------------------------- Pallas kernels ------------------------------ #

def _fused_vpu_kernel(x_ref, p_ref, o_ref):
    """Tiny-shape path (D<=8): params in SMEM, VPU scalar-broadcast FMA, no MXU."""
    d_in = x_ref.shape[1]
    d_out = o_ref.shape[1]
    dp = p_ref.shape[0] - 8            # bias row (sublane-aligned by pack_params)
    x = x_ref[...]                     # (B, d_in) f32 vreg-resident
    for j in range(d_out):             # static unroll (d_out <= 8)
        col = x[:, 0:1] * p_ref[0, j]
        for i in range(1, d_in):
            col = col + x[:, i:i + 1] * p_ref[i, j]
        o_ref[:, j:j + 1] = col + p_ref[dp, j]


def _fused_mxu_kernel(x_ref, p_ref, o_ref):
    """Lane-dense path: single fused matmul + bias, f32 accumulate/epilogue."""
    d_in = x_ref.shape[1]
    dp = p_ref.shape[0] - 8
    w = p_ref[0:d_in, :]               # (d_in, d_out), sublane-aligned view
    b = p_ref[dp:dp + 1, :]            # (1, d_out),   sublane-aligned view
    y = jnp.dot(x_ref[...], w, preferred_element_type=jnp.float32) + b
    o_ref[...] = y.astype(o_ref.dtype)


# ------------------------------- wrappers ---------------------------------- #

def _forward_small_pallas(x, packed):
    b, d_in = x.shape
    d_out = packed.shape[1]
    return pl.pallas_call(
        _fused_vpu_kernel,
        out_shape=jax.ShapeDtypeStruct((b, d_out), jnp.float32),
        in_specs=[
            pl.BlockSpec((b, d_in), lambda: (0, 0),
                         memory_space=pltpu.MemorySpace.VMEM),
            pl.BlockSpec(memory_space=pltpu.MemorySpace.SMEM),
        ],
        out_specs=pl.BlockSpec((b, d_out), lambda: (0, 0),
                               memory_space=pltpu.MemorySpace.VMEM),
    )(x, packed)


def _forward_mxu_pallas(x, packed):
    b, d_in = x.shape
    d_out = packed.shape[1]
    # Largest batch tile (<=128 for this demo) that divides B; lane-dense output.
    tb = next(c for c in (128, 64, 32, 16, 8) if b % c == 0)
    return pl.pallas_call(
        _fused_mxu_kernel,
        out_shape=jax.ShapeDtypeStruct((b, d_out), jnp.float32),
        grid=(b // tb,),
        in_specs=[
            pl.BlockSpec((tb, d_in), lambda i: (i, 0)),
            pl.BlockSpec(packed.shape, lambda i: (0, 0)),   # weights stationary
        ],
        out_specs=pl.BlockSpec((tb, d_out), lambda i: (i, 0)),
        compiler_params=pltpu.CompilerParams(
            dimension_semantics=("parallel",)),
    )(x, packed)


def model_forward(x, packed, *, prefer_pallas_small=True):
    """Forward of the fused module.  Dispatches by shape (perf-review item 2)."""
    b, d_in = x.shape
    d_out = packed.shape[1]
    dp = packed.shape[0] - 8
    lane_dense = (d_in % 128 == 0) and (d_out % 128 == 0) and (b % 8 == 0)
    if lane_dense:
        out2d = _forward_mxu_pallas(x, packed)
    elif prefer_pallas_small and d_in <= 8 and d_out <= 8:
        out2d = _forward_small_pallas(x, packed)
    else:
        # Tiny non-lane-dense shapes are pure launch/DMA overhead in Pallas;
        # a plain XLA fusion is strictly faster here.
        out2d = x @ packed[0:d_in, :] + packed[dp, :]
    # torch.flatten(y, start_dim=0): free metadata reshape outside the kernel.
    return out2d.reshape(-1)


if __name__ == "__main__":
    key = jax.random.PRNGKey(0)
    (kx, k1w, k1b, k2w, k2b,
     kx2, k3w, k3b, k4w, k4b) = jax.random.split(key, 10)

    # -------- the module's actual shapes: x = torch.randn(2, 2), 2x Linear(2,2)
    x = jax.random.normal(kx, (2, 2), dtype=jnp.float32)
    w1 = jax.random.normal(k1w, (2, 2), dtype=jnp.float32) * 0.5
    b1 = jax.random.normal(k1b, (2,), dtype=jnp.float32) * 0.1
    w2 = jax.random.normal(k2w, (2, 2), dtype=jnp.float32) * 0.5
    b2 = jax.random.normal(k2b, (2,), dtype=jnp.float32) * 0.1

    packed = pack_params(w1, b1, w2, b2)          # one-time fold + pack
    out = model_forward(x, packed, prefer_pallas_small=True)  # Pallas VPU/SMEM path
    jax.block_until_ready(out)

    ref = ((x @ w1.T + b1) @ w2.T + b2).reshape(-1)
    assert out.shape == (4,)
    assert jnp.allclose(out, ref, atol=1e-5), (out, ref)

    # -------- scaled self-test of the lane-dense MXU path (tiled, parallel grid)
    B, D = 256, 128
    xl = jax.random.normal(kx2, (B, D), dtype=jnp.float32)
    w1l = jax.random.normal(k3w, (D, D), dtype=jnp.float32) * 0.05
    b1l = jax.random.normal(k3b, (D,), dtype=jnp.float32) * 0.1
    w2l = jax.random.normal(k4w, (D, D), dtype=jnp.float32) * 0.05
    b2l = jax.random.normal(k4b, (D,), dtype=jnp.float32) * 0.1
    packedl = pack_params(w1l, b1l, w2l, b2l)
    outl = model_forward(xl, packedl)
    jax.block_until_ready(outl)
    refl = ((xl @ w1l.T + b1l) @ w2l.T + b2l).reshape(-1)
    assert jnp.allclose(outl, refl, atol=1e-3, rtol=1e-3), \
        float(jnp.max(jnp.abs(outl - refl)))

    print("KERNEL_OK")
</pallas_src>

<mosaic_0001>
module attributes {stable_mosaic.version = 11 : i64} {
  func.func @_fused_vpu_kernel(%arg0: memref<2x2xf32, #tpu.memory_space<vmem>>, %arg1: memref<16x2xf32, #tpu.memory_space<smem>>, %arg2: memref<2x2xf32, #tpu.memory_space<vmem>>) attributes {dimension_semantics = [], scalar_prefetch = 0 : i64, scratch_operands = 0 : i64, tpu.core_type = #tpu.core_type<tc>} {
    %c0 = arith.constant 0 : index
    %c0_0 = arith.constant 0 : index
    %0 = vector.load %arg0[%c0, %c0_0] : memref<2x2xf32, #tpu.memory_space<vmem>>, vector<2x2xf32>
    %1 = vector.extract_strided_slice %0 {offsets = [0, 0], sizes = [2, 1], strides = [1, 1]} : vector<2x2xf32> to vector<2x1xf32>
    %c0_1 = arith.constant 0 : index
    %c0_2 = arith.constant 0 : index
    %2 = memref.load %arg1[%c0_1, %c0_2] : memref<16x2xf32, #tpu.memory_space<smem>>
    %3 = vector.broadcast %2 : f32 to vector<2x1xf32>
    %4 = arith.mulf %1, %3 : vector<2x1xf32>
    %5 = vector.extract_strided_slice %0 {offsets = [0, 1], sizes = [2, 1], strides = [1, 1]} : vector<2x2xf32> to vector<2x1xf32>
    %c1 = arith.constant 1 : index
    %c0_3 = arith.constant 0 : index
    %6 = memref.load %arg1[%c1, %c0_3] : memref<16x2xf32, #tpu.memory_space<smem>>
    %7 = vector.broadcast %6 : f32 to vector<2x1xf32>
    %8 = arith.mulf %5, %7 : vector<2x1xf32>
    %9 = arith.addf %4, %8 : vector<2x1xf32>
    %c8 = arith.constant 8 : index
    %c0_4 = arith.constant 0 : index
    %10 = memref.load %arg1[%c8, %c0_4] : memref<16x2xf32, #tpu.memory_space<smem>>
    %11 = vector.broadcast %10 : f32 to vector<2x1xf32>
    %12 = arith.addf %9, %11 : vector<2x1xf32>
    %c0_5 = arith.constant 0 : index
    %c0_6 = arith.constant 0 : index
    %13 = vector.load %arg2[%c0_5, %c0_6] : memref<2x2xf32, #tpu.memory_space<vmem>>, vector<2x1xf32>
    tpu.vector_store %arg2[%c0_5, %c0_6], %12 {strides = array<i32>} : memref<2x2xf32, #tpu.memory_space<vmem>>, vector<2x1xf32>,
    %14 = vector.extract_strided_slice %0 {offsets = [0, 0], sizes = [2, 1], strides = [1, 1]} : vector<2x2xf32> to vector<2x1xf32>
    %c0_7 = arith.constant 0 : index
    %c1_8 = arith.constant 1 : index
    %15 = memref.load %arg1[%c0_7, %c1_8] : memref<16x2xf32, #tpu.memory_space<smem>>
    %16 = vector.broadcast %15 : f32 to vector<2x1xf32>
    %17 = arith.mulf %14, %16 : vector<2x1xf32>
    %18 = vector.extract_strided_slice %0 {offsets = [0, 1], sizes = [2, 1], strides = [1, 1]} : vector<2x2xf32> to vector<2x1xf32>
    %c1_9 = arith.constant 1 : index
    %c1_10 = arith.constant 1 : index
    %19 = memref.load %arg1[%c1_9, %c1_10] : memref<16x2xf32, #tpu.memory_space<smem>>
    %20 = vector.broadcast %19 : f32 to vector<2x1xf32>
    %21 = arith.mulf %18, %20 : vector<2x1xf32>
    %22 = arith.addf %17, %21 : vector<2x1xf32>
    %c8_11 = arith.constant 8 : index
    %c1_12 = arith.constant 1 : index
    %23 = memref.load %arg1[%c8_11, %c1_12] : memref<16x2xf32, #tpu.memory_space<smem>>
    %24 = vector.broadcast %23 : f32 to vector<2x1xf32>
    %25 = arith.addf %22, %24 : vector<2x1xf32>
    %c0_13 = arith.constant 0 : index
    %c1_14 = arith.constant 1 : index
    %26 = vector.load %arg2[%c0_13, %c1_14] : memref<2x2xf32, #tpu.memory_space<vmem>>, vector<2x1xf32>
    tpu.vector_store %arg2[%c0_13, %c1_14], %25 {strides = array<i32>} : memref<2x2xf32, #tpu.memory_space<vmem>>, vector<2x1xf32>,
    return
  }
}

</mosaic_0001>

<llo_original>
// kernel: tpu_custom_call.1
$region0: #{tpu_custom_call.1}
  #allocation0 [shape = 'u32[]', space=smem, size = 0x4, offset = 0x4, fixed_abs, tag = 'smem constant byte address 0x4 - core index']
  #allocation1 [shape = 'u32[144,128]{1,0:T(1,128)}', space=vmem, size = 0x12000, scoped, tag = 'internal scratch']
  %s0 = inlined_call_operand.vmem [shape: f32[2,2], index: 0, kind: input, shape index: {}]
  %s1 = inlined_call_operand.vmem [shape: f32[16,2], index: 1, kind: input, shape index: {}]
  %s2 = inlined_call_operand.hbm [shape: f32[2,2], index: 2, kind: output, shape index: {}]
  %s3 = sld [smem:[#allocation0]]
  $region22: #{tpu_custom_call.1} parent=0
    _
  %s5 = ssub.s32 1, %s3
  %s6 = scalar_select 0, %s5, %s3
  $region1: #{tpu_custom_call.1} parent=0
    #allocation2 [shape = 'u8[8192]{0}', space=smem, size = 0x2000, scoped, tag = 'input window, operand 1, single buffered']
    #allocation3 [shape = 's32[1]{0}', space=sflag, size = 0x4, scoped, tag = 'scoped memory for tpu_custom_call.1']
    #allocation4 [shape = 's32[1]{0}', space=sflag, size = 0x4, scoped, tag = 'scoped memory for tpu_custom_call.1']
    #allocation5 [shape = 'u8[1024]{0}', space=vmem, size = 0x400, scoped, tag = 'output window, operand 0, single buffered']
    %7 = vsyncpa [#allocation4], 0
    %8 = vsyncpa [#allocation3], 0
    // Predicated region
    $region2: #{tpu_custom_call.1} parent=1 // pred_check
      _
    $region3: #{tpu_custom_call.1} parent=1 // pred_check_branch
      %10 = sbr.rel (0) target = $region5
    $region4: #{tpu_custom_call.1} parent=1 // pred_region
      _
    $region5: #{tpu_custom_call.1} parent=1 // pred_fallthru
      _
    // Predicated region
    $region6: #{tpu_custom_call.1} parent=1 // pred_check
      _
    $region7: #{tpu_custom_call.1} parent=1 // pred_check_branch
      %12 = sbr.rel (0) target = $region9
    $region8: #{tpu_custom_call.1} parent=1 // pred_region
      %s14 = ssub.s32 256, 256
      %15 = vsyncadd [#allocation4], %s14
      %s16 = sshll.u32 %s1, 4
      %s17 = int_to_ptr.vmem [resolvable:$true] %s16
      %22 = dma.vmem_to_smem %s17, 256, [#allocation2], [#allocation4], 128, 128, 8
    $region9: #{tpu_custom_call.1} parent=1 // pred_fallthru
      _
    // Predicated region
    $region10: #{tpu_custom_call.1} parent=1 // pred_check
      _
    $region11: #{tpu_custom_call.1} parent=1 // pred_check_branch
      %24 = sbr.rel (0) target = $region13
    $region12: #{tpu_custom_call.1} parent=1 // pred_region
      %25 = dma.done [#allocation4], 256
    $region13: #{tpu_custom_call.1} parent=1 // pred_fallthru
      _
    %26 = sfence
    %v27 = vld [vmem:[%s0] sm:$0x3]
    %s28 = sld [smem:[#allocation2]]
    %v29 = vstv %s28
    %v30 = vmul.f32 %v27, %v29
    %s31 = sld [smem:[#allocation2 + $0x80]]
    %v32 = vstv %s31
    %v33 = vmul.f32 %v27, %v32
    %35 = vrot.lane.b32.xlu0 %v33, 127
    %v36 = vpop.permute.xlu0 %35
    %v38 = vadd.f32 %v30, %v36
    %s39 = sld [smem:[#allocation2 + $0x400]]
    %v40 = vstv %s39
    %v41 = vadd.f32 %v38, %v40
    %vm42 = vcmask 1024
    %43 = vst.msk [vmem:[#allocation5] sm:$0x3] %vm42, %v41
    %s44 = sld [smem:[#allocation2 + $0x1]]
    %v45 = vstv %s44
    %v46 = vmul.f32 %v27, %v45
    %s47 = sld [smem:[#allocation2 + $0x81]]
    %v48 = vstv %s47
    %v49 = vmul.f32 %v27, %v48
    %51 = vrot.lane.b32.xlu0 %v49, 127
    %v52 = vpop.permute.xlu0 %51
    %v54 = vadd.f32 %v46, %v52
    %s55 = sld [smem:[#allocation2 + $0x401]]
    %v56 = vstv %s55
    %v57 = vadd.f32 %v54, %v56
    %59 = vrot.lane.b32.xlu0 %v57, 1
    %v60 = vpop.permute.xlu0 %59
    %vm62 = vcmask 9224
    %63 = vst.msk [vmem:[#allocation5] sm:$0x3] %vm62, %v60
    // Predicated region
    $region14: #{tpu_custom_call.1} parent=1 // pred_check
      _
    $region15: #{tpu_custom_call.1} parent=1 // pred_check_branch
      %65 = sbr.rel (0) target = $region17
    $region16: #{tpu_custom_call.1} parent=1 // pred_region
      %s67 = ssub.s32 32, 32
      %68 = vsyncadd [#allocation3], %s67
      %s70 = sshll.u32 [#allocation5], 4
      %s71 = int_to_ptr.vmem [resolvable:$true] %s70
      %73 = dma.vmem_to_hbm [thread:$0]  %s71, 32, %s2, [#allocation3]
    $region17: #{tpu_custom_call.1} parent=1 // pred_fallthru
      _
    // Predicated region
    $region18: #{tpu_custom_call.1} parent=1 // pred_check
      _
    $region19: #{tpu_custom_call.1} parent=1 // pred_check_branch
      %75 = sbr.rel (0) target = $region21
    $region20: #{tpu_custom_call.1} parent=1 // pred_region
      %76 = dma.done [#allocation3], 32
    $region21: #{tpu_custom_call.1} parent=1 // pred_fallthru
      _
    %77 = vsyncpa [#allocation3], 1
    %78 = vsyncpa [#allocation4], 1

</llo_original>
